<compile_context>
chip_gen: v5e
topology: v5e:2x2
jax: 0.10.0
libtpu: 0.0.40
codegen_flags: <defaults>
</compile_context>

<pallas_src>
import functools

import jax
import jax.numpy as jnp
from jax.experimental import pallas as pl
from jax.experimental.pallas import tpu as pltpu

SUBLANE = 8


def _round_up(x, m):
    return (x + m - 1) // m * m


def _choose_tile(batch, tile_b):
    """Pick a batch tile (multiple of 8) and the padded batch size."""
    bp0 = _round_up(batch, SUBLANE)
    tb = min(_round_up(tile_b, SUBLANE), bp0)
    # Keep >= 2 grid steps when the batch is large enough so the "parallel"
    # axis can split across v7x's two TensorCores.  On single-TC v5e/v6e this
    # only adds ~0.35 us.
    if bp0 >= 2 * SUBLANE and bp0 <= tb:
        tb = _round_up((bp0 + 1) // 2, SUBLANE)
    bp = _round_up(batch, tb)
    return tb, bp


def anet_kernel(x_ref, w1_ref, b1_ref, w2_ref, b2_ref, o_ref):
    # fc1 + relu  (MXU matmul, f32 accumulation)
    x = x_ref[...]
    h1 = jnp.dot(x, w1_ref[...], preferred_element_type=jnp.float32) + b1_ref[...]
    h1 = jnp.maximum(h1, 0.0)

    # fc2 + relu
    h2 = jnp.dot(h1, w2_ref[...], preferred_element_type=jnp.float32) + b2_ref[...]
    h2 = jnp.maximum(h2, 0.0)

    # Numerically stable, exact softmax over the feature (lane) axis.
    m = jnp.max(h2, axis=1, keepdims=True)
    e = jnp.exp(h2 - m)
    denom = jnp.sum(e, axis=1, keepdims=True)
    o_ref[...] = (e / denom).astype(o_ref.dtype)


@functools.partial(jax.jit, static_argnames=("tile_b",))
def anetwork_forward(state, w1, b1, w2, b2, *, tile_b=2048):
    """state: (B, S) f32. w1: (S, H1), b1: (1, H1), w2: (H1, H2), b2: (1, H2)."""
    B, S = state.shape
    H1 = w1.shape[1]
    H2 = w2.shape[1]

    tb, Bp = _choose_tile(B, tile_b)
    xp = state if Bp == B else jnp.pad(state, ((0, Bp - B), (0, 0)))

    out = pl.pallas_call(
        anet_kernel,
        out_shape=jax.ShapeDtypeStruct((Bp, H2), jnp.float32),
        grid_spec=pltpu.PrefetchScalarGridSpec(
            num_scalar_prefetch=0,
            grid=(Bp // tb,),
            in_specs=[
                pl.BlockSpec((tb, S), lambda i: (i, 0)),    # streamed activations
                pl.BlockSpec((S, H1), lambda i: (0, 0)),    # weights stay resident
                pl.BlockSpec((1, H1), lambda i: (0, 0)),
                pl.BlockSpec((H1, H2), lambda i: (0, 0)),
                pl.BlockSpec((1, H2), lambda i: (0, 0)),
            ],
            out_specs=pl.BlockSpec((tb, H2), lambda i: (i, 0)),  # unpadded store
        ),
        compiler_params=pltpu.CompilerParams(
            dimension_semantics=("parallel",),
        ),
    )(xp, w1, b1, w2, b2)

    return out if Bp == B else out[:B]


def init_linear(key, fan_in, fan_out):
    """PyTorch-style Linear init: U(-1/sqrt(fan_in), 1/sqrt(fan_in)).
    Weight stored transposed as (fan_in, fan_out) for x @ W."""
    kw, kb = jax.random.split(key)
    bound = 1.0 / (fan_in ** 0.5)
    w = jax.random.uniform(kw, (fan_in, fan_out), jnp.float32, -bound, bound)
    b = jax.random.uniform(kb, (1, fan_out), jnp.float32, -bound, bound)
    return w, b


def reference_forward(state, w1, b1, w2, b2):
    h1 = jnp.maximum(state @ w1 + b1, 0.0)
    h2 = jnp.maximum(h1 @ w2 + b2, 0.0)
    return jax.nn.softmax(h2, axis=1)


if __name__ == "__main__":
    # Small shapes consistent with the module.
    batch = 8
    state_size = 8
    action_size = 4
    h1_size = 32
    h2_size = 16

    root = jax.random.PRNGKey(0)
    k_x, k1, k2, k3, k_big = jax.random.split(root, 5)

    state = jax.random.normal(k_x, (batch, state_size), jnp.float32)

    w1, b1 = init_linear(k1, state_size, h1_size)          # fc1
    w2, b2 = init_linear(k2, h1_size, h2_size)             # fc2
    w_out, b_out = init_linear(k3, h1_size, action_size)   # self.output (unused in forward)

    # Small run (grid of 1 tile).
    out = anetwork_forward(state, w1, b1, w2, b2)
    out = jax.block_until_ready(out)
    ref = reference_forward(state, w1, b1, w2, b2)
    assert out.shape == (batch, h2_size)
    assert jnp.allclose(out, ref, atol=1e-4, rtol=1e-4), "mismatch vs JAX reference"
    assert jnp.allclose(jnp.sum(out, axis=1), 1.0, atol=1e-4), "softmax rows must sum to 1"

    # Larger, ragged batch exercises batch padding and the multi-tile
    # (megacore-parallel) path.
    big_b = 500
    big_state = jax.random.normal(k_big, (big_b, state_size), jnp.float32)
    big_out = anetwork_forward(big_state, w1, b1, w2, b2)
    big_out = jax.block_until_ready(big_out)
    big_ref = reference_forward(big_state, w1, b1, w2, b2)
    assert big_out.shape == (big_b, h2_size)
    assert jnp.allclose(big_out, big_ref, atol=1e-4, rtol=1e-4), "batched mismatch"
    assert jnp.allclose(jnp.sum(big_out, axis=1), 1.0, atol=1e-4), "batched row sums"

    print("KERNEL_OK")
</pallas_src>

<mosaic_0001>
module attributes {stable_mosaic.version = 11 : i64} {
  func.func @anet_kernel(%arg0: i32, %arg1: memref<8x8xf32, #tpu.memory_space<vmem>>, %arg2: memref<8x32xf32, #tpu.memory_space<vmem>>, %arg3: memref<1x32xf32, #tpu.memory_space<vmem>>, %arg4: memref<32x16xf32, #tpu.memory_space<vmem>>, %arg5: memref<1x16xf32, #tpu.memory_space<vmem>>, %arg6: memref<8x16xf32, #tpu.memory_space<vmem>>) attributes {dimension_semantics = [#tpu.dimension_semantics<parallel>], iteration_bounds = array<i64: 1>, scalar_prefetch = 0 : i64, scratch_operands = 0 : i64, tpu.core_type = #tpu.core_type<tc>, window_params = [{transform_indices = @transform_0, window_bounds = array<i64: 8, 8>}, {pipeline_mode = #tpu.pipeline_mode<synchronous>, transform_indices = @transform_1, window_bounds = array<i64: 8, 32>}, {pipeline_mode = #tpu.pipeline_mode<synchronous>, transform_indices = @transform_2, window_bounds = array<i64: 1, 32>}, {pipeline_mode = #tpu.pipeline_mode<synchronous>, transform_indices = @transform_3, window_bounds = array<i64: 32, 16>}, {pipeline_mode = #tpu.pipeline_mode<synchronous>, transform_indices = @transform_4, window_bounds = array<i64: 1, 16>}, {transform_indices = @transform_5, window_bounds = array<i64: 8, 16>}]} {
    %c0 = arith.constant 0 : index
    %c0_0 = arith.constant 0 : index
    %0 = vector.load %arg1[%c0, %c0_0] : memref<8x8xf32, #tpu.memory_space<vmem>>, vector<8x8xf32>
    %c0_1 = arith.constant 0 : index
    %c0_2 = arith.constant 0 : index
    %1 = vector.load %arg2[%c0_1, %c0_2] : memref<8x32xf32, #tpu.memory_space<vmem>>, vector<8x32xf32>
    %cst = arith.constant dense<0.000000e+00> : vector<8x32xf32>
    %2 = tpu.matmul %0, %1, %cst {dimension_numbers = #tpu.dot_dimension_numbers<[1], [0], [0], [1], [0, 0, 1, 1], [], []>} : vector<8x8xf32>, vector<8x32xf32>, vector<8x32xf32> -> vector<8x32xf32>
    %c0_3 = arith.constant 0 : index
    %c0_4 = arith.constant 0 : index
    %3 = vector.load %arg3[%c0_3, %c0_4] : memref<1x32xf32, #tpu.memory_space<vmem>>, vector<1x32xf32>
    %4 = vector.broadcast %3 : vector<1x32xf32> to vector<8x32xf32>
    %5 = arith.addf %2, %4 : vector<8x32xf32>
    %cst_5 = arith.constant 0.000000e+00 : f32
    %6 = vector.broadcast %cst_5 : f32 to vector<8x32xf32>
    %7 = arith.maximumf %5, %6 : vector<8x32xf32>
    %c0_6 = arith.constant 0 : index
    %c0_7 = arith.constant 0 : index
    %8 = vector.load %arg4[%c0_6, %c0_7] : memref<32x16xf32, #tpu.memory_space<vmem>>, vector<32x16xf32>
    %cst_8 = arith.constant dense<0.000000e+00> : vector<8x16xf32>
    %9 = tpu.matmul %7, %8, %cst_8 {dimension_numbers = #tpu.dot_dimension_numbers<[1], [0], [0], [1], [0, 0, 1, 1], [], []>} : vector<8x32xf32>, vector<32x16xf32>, vector<8x16xf32> -> vector<8x16xf32>
    %c0_9 = arith.constant 0 : index
    %c0_10 = arith.constant 0 : index
    %10 = vector.load %arg5[%c0_9, %c0_10] : memref<1x16xf32, #tpu.memory_space<vmem>>, vector<1x16xf32>
    %11 = vector.broadcast %10 : vector<1x16xf32> to vector<8x16xf32>
    %12 = arith.addf %9, %11 : vector<8x16xf32>
    %cst_11 = arith.constant 0.000000e+00 : f32
    %13 = vector.broadcast %cst_11 : f32 to vector<8x16xf32>
    %14 = arith.maximumf %12, %13 : vector<8x16xf32>
    %cst_12 = arith.constant dense<0xFF800000> : vector<8xf32>
    %15 = vector.multi_reduction <maximumf>, %14, %cst_12 [1] : vector<8x16xf32> to vector<8xf32>
    %16 = vector.shape_cast %15 : vector<8xf32> to vector<8x1xf32>
    %17 = vector.broadcast %16 : vector<8x1xf32> to vector<8x16xf32>
    %18 = arith.subf %14, %17 : vector<8x16xf32>
    %19 = math.exp %18 : vector<8x16xf32>
    %cst_13 = arith.constant dense<0.000000e+00> : vector<8xf32>
    %20 = vector.multi_reduction <add>, %19, %cst_13 [1] : vector<8x16xf32> to vector<8xf32>
    %21 = vector.shape_cast %20 : vector<8xf32> to vector<8x1xf32>
    %22 = vector.broadcast %21 : vector<8x1xf32> to vector<8x16xf32>
    %23 = arith.divf %19, %22 : vector<8x16xf32>
    %c0_14 = arith.constant 0 : index
    %c0_15 = arith.constant 0 : index
    %24 = vector.load %arg6[%c0_14, %c0_15] : memref<8x16xf32, #tpu.memory_space<vmem>>, vector<8x16xf32>
    tpu.vector_store %arg6[%c0_14, %c0_15], %23 {strides = array<i32>} : memref<8x16xf32, #tpu.memory_space<vmem>>, vector<8x16xf32>,
    return
  }
  func.func @transform_0(%arg0: i32) -> (i32, i32) {
    %c0_i32 = arith.constant 0 : i32
    %c0_i32_0 = arith.constant 0 : i32
    return %arg0, %c0_i32 : i32, i32
  }
  func.func @transform_1(%arg0: i32) -> (i32, i32) {
    %c0_i32 = arith.constant 0 : i32
    %c0_i32_0 = arith.constant 0 : i32
    %c0_i32_1 = arith.constant 0 : i32
    return %c0_i32, %c0_i32_0 : i32, i32
  }
  func.func @transform_2(%arg0: i32) -> (i32, i32) {
    %c0_i32 = arith.constant 0 : i32
    %c0_i32_0 = arith.constant 0 : i32
    %c0_i32_1 = arith.constant 0 : i32
    return %c0_i32, %c0_i32_0 : i32, i32
  }
  func.func @transform_3(%arg0: i32) -> (i32, i32) {
    %c0_i32 = arith.constant 0 : i32
    %c0_i32_0 = arith.constant 0 : i32
    %c0_i32_1 = arith.constant 0 : i32
    return %c0_i32, %c0_i32_0 : i32, i32
  }
  func.func @transform_4(%arg0: i32) -> (i32, i32) {
    %c0_i32 = arith.constant 0 : i32
    %c0_i32_0 = arith.constant 0 : i32
    %c0_i32_1 = arith.constant 0 : i32
    return %c0_i32, %c0_i32_0 : i32, i32
  }
  func.func @transform_5(%arg0: i32) -> (i32, i32) {
    %c0_i32 = arith.constant 0 : i32
    %c0_i32_0 = arith.constant 0 : i32
    return %arg0, %c0_i32 : i32, i32
  }
}

</mosaic_0001>

<llo_original>
// kernel: anetwork_forward.1
$region0: #{anetwork_forward.1}
  #allocation0 [shape = 'u32[]', space=smem, size = 0x4, offset = 0x4, fixed_abs, tag = 'smem constant byte address 0x4 - core index']
  #allocation1 [shape = 'u32[72,128]{1,0:T(1,128)}', space=vmem, size = 0x9000, scoped, tag = 'internal scratch']
  %s0 = inlined_call_operand.vmem [shape: f32[8,8], index: 0, kind: input, shape index: {}]
  %s1 = inlined_call_operand.vmem [shape: f32[8,32], index: 1, kind: input, shape index: {}]
  %s2 = inlined_call_operand.vmem [shape: f32[1,32], index: 2, kind: input, shape index: {}]
  %s3 = inlined_call_operand.vmem [shape: f32[32,16], index: 3, kind: input, shape index: {}]
  %s4 = inlined_call_operand.vmem [shape: f32[1,16], index: 4, kind: input, shape index: {}]
  %s5 = inlined_call_operand.hbm [shape: f32[8,16], index: 5, kind: output, shape index: {}]
  %s6 = sld [smem:[#allocation0]]
  $region30: #{anetwork_forward.1} parent=0
    _
  %s8 = ssub.s32 1, %s6
  %s9 = scalar_select 0, %s8, %s6
  $region1: #{anetwork_forward.1} parent=0
    #allocation2 [shape = 'u8[4096]{0}', space=vmem, size = 0x1000, scoped, tag = 'output window, operand 0, single buffered']
    #allocation3 [shape = 's32[1]{0}', space=sflag, size = 0x4, scoped, tag = 'scoped memory for anetwork_forward.1']
    %10 = vsyncpa [#allocation3], 0
    // Predicated region
    $region2: #{anetwork_forward.1} parent=1 // pred_check
      _
    $region3: #{anetwork_forward.1} parent=1 // pred_check_branch
      %12 = sbr.rel (0) target = $region5
    $region4: #{anetwork_forward.1} parent=1 // pred_region
      _
    $region5: #{anetwork_forward.1} parent=1 // pred_fallthru
      _
    // Predicated region
    $region6: #{anetwork_forward.1} parent=1 // pred_check
      _
    $region7: #{anetwork_forward.1} parent=1 // pred_check_branch
      %14 = sbr.rel (0) target = $region9
    $region8: #{anetwork_forward.1} parent=1 // pred_region
      _
    $region9: #{anetwork_forward.1} parent=1 // pred_fallthru
      _
    // Predicated region
    $region10: #{anetwork_forward.1} parent=1 // pred_check
      _
    $region11: #{anetwork_forward.1} parent=1 // pred_check_branch
      %16 = sbr.rel (0) target = $region13
    $region12: #{anetwork_forward.1} parent=1 // pred_region
      _
    $region13: #{anetwork_forward.1} parent=1 // pred_fallthru
      _
    // Predicated region
    $region14: #{anetwork_forward.1} parent=1 // pred_check
      _
    $region15: #{anetwork_forward.1} parent=1 // pred_check_branch
      %18 = sbr.rel (0) target = $region17
    $region16: #{anetwork_forward.1} parent=1 // pred_region
      _
    $region17: #{anetwork_forward.1} parent=1 // pred_fallthru
      _
    // Predicated region
    $region18: #{anetwork_forward.1} parent=1 // pred_check
      _
    $region19: #{anetwork_forward.1} parent=1 // pred_check_branch
      %20 = sbr.rel (0) target = $region21
    $region20: #{anetwork_forward.1} parent=1 // pred_region
      _
    $region21: #{anetwork_forward.1} parent=1 // pred_fallthru
      _
    %v21 = vld [vmem:[%s0] sm:$0xff]
    %v22 = vld [vmem:[%s1] sm:$0xff]
    %v23 = vld [vmem:[%s2] sm:$0x1]
    %v25 = vperm.slane %v23, 0
    %vm27 = vcmask 64512
    %v29 = vsel %vm27, %v21, 0
    %31 = vmatpush.msra.mxu0 0.0
    %32 = vmatpush.msra.mxu0 0.0
    %33 = vmatpush.msra.mxu0 0.0
    %34 = vmatpush.msra.mxu0 0.0
    %35 = vmatpush.msra.mxu0 0.0
    %36 = vmatpush.msra.mxu0 0.0
    %37 = vmatpush.msra.mxu0 0.0
    %38 = vmatpush.msra.mxu0 0.0
    %39 = vmatpush.msra.mxu0 0.0
    %40 = vmatpush.msra.mxu0 0.0
    %41 = vmatpush.msra.mxu0 0.0
    %42 = vmatpush.msra.mxu0 0.0
    %43 = vmatpush.msra.mxu0 0.0
    %44 = vmatpush.msra.mxu0 0.0
    %45 = vmatpush.msra.mxu0 0.0
    %46 = vmatpush.msra.mxu0 %v22
    %47 = vmatmul.f32.gmra.mxu0 %v29
    %v48 = vpop.f32.mrf.mxu0
    %v49 = vadd.f32 %v25, %v48
    %50 = vdwg.mxu0
    %v51 = vmax.f32 %v49, 0.0
    %v52 = vld [vmem:[%s3] sm:$0xff]
    %v53 = vld [vmem:[%s3 + $0x8] sm:$0xff]
    %v54 = vld [vmem:[%s3 + $0x10] sm:$0xff]
    %v55 = vld [vmem:[%s3 + $0x18] sm:$0xff]
    %v56 = vld [vmem:[%s4] sm:$0x1]
    %v58 = vperm.slane %v56, 0
    %vm60 = vcmask 261120
    %v62 = vsel %vm60, %v51, 0
    %64 = vmatpush.msra.mxu0 0.0
    %65 = vmatpush.msra.mxu0 0.0
    %66 = vmatpush.msra.mxu0 0.0
    %67 = vmatpush.msra.mxu0 0.0
    %68 = vmatpush.msra.mxu0 0.0
    %69 = vmatpush.msra.mxu0 0.0
    %70 = vmatpush.msra.mxu0 0.0
    %71 = vmatpush.msra.mxu0 0.0
    %72 = vmatpush.msra.mxu0 0.0
    %73 = vmatpush.msra.mxu0 0.0
    %74 = vmatpush.msra.mxu0 0.0
    %75 = vmatpush.msra.mxu0 0.0
    %76 = vmatpush.msra.mxu0 %v55
    %77 = vmatpush.msra.mxu0 %v54
    %78 = vmatpush.msra.mxu0 %v53
    %79 = vmatpush.msra.mxu0 %v52
    %80 = vmatmul.f32.gmra.mxu0 %v62
    %v81 = vpop.f32.mrf.mxu0
    %v82 = vadd.f32 %v58, %v81
    %83 = vdwg.mxu0
    %v84 = vmax.f32 %v82, 0.0
    %vm85 = vcmask 130048
    %v86 = vsel %vm85, %v84, -inf
    %87 = vmax.xlane.f32.xlu0 %v86
    %v88 = vpop.xlane.xlu0 %87
    %v89 = vsub.f32 %v84, %v88
    %v90 = vmul.f32 %v89, 1.442695
    %v91 = vpow.pop %v90
    %v92 = vsel %vm85, %v91, 0.0
    %93 = vadd.xlane.f32.xlu0 %v92
    %v94 = vpop.xlane.xlu0 %93
    %v95 = vrcp.pop %v94
    %v96 = vmul.f32 %v94, %v95
    %v97 = vsub.f32 1.0, %v96
    %v98 = vmul.f32 %v95, %v97
    %v99 = vadd.f32 %v95, %v98
    %vm100 = vweird.f32 %v94
    %vm101 = vweird.f32 %v95
    %vm102 = vmor %vm100, %vm101
    %v103 = vsel %vm102, %v95, %v99
    %v104 = vand.u32 2147483647, %v94
    %vm105 = vcmp.eq.f32.partialorder %v104, 8.507059e+37
    %v106 = vand.u32 %v94, 2147483648
    %v107 = vor.u32 1.1754944e-38, %v106
    %v108 = vsel %vm105, %v107, %v103
    %v109 = vmul.f32 %v91, %v108
    %110 = vst.msk [vmem:[#allocation2] sm:$0xff] %vm85, %v109
    // Predicated region
    $region22: #{anetwork_forward.1} parent=1 // pred_check
      _
    $region23: #{anetwork_forward.1} parent=1 // pred_check_branch
      %112 = sbr.rel (0) target = $region25
    $region24: #{anetwork_forward.1} parent=1 // pred_region
      %114 = vsyncadd [#allocation3], 0
      %s116 = sshll.u32 [#allocation2], 4
      %s117 = int_to_ptr.vmem [resolvable:$true] %s116
      %s118 = sshll.u32 %s5, 4
      %s119 = int_to_ptr.hbm [resolvable:$true] %s118
      %121 = dma.vmem_to_hbm [thread:$0]  %s117, 128, %s119, [#allocation3]
    $region25: #{anetwork_forward.1} parent=1 // pred_fallthru
      _
    // Predicated region
    $region26: #{anetwork_forward.1} parent=1 // pred_check
      _
    $region27: #{anetwork_forward.1} parent=1 // pred_check_branch
      %123 = sbr.rel (0) target = $region29
    $region28: #{anetwork_forward.1} parent=1 // pred_region
      %125 = dma.done [#allocation3], 128
    $region29: #{anetwork_forward.1} parent=1 // pred_fallthru
      _
    %126 = vsyncpa [#allocation3], 1

</llo_original>
